<compile_context>
chip_gen: v6e
topology: v6e:2x2x1
jax: 0.10.0
libtpu: 0.0.40
codegen_flags: <defaults>
</compile_context>

<pallas_src>
import jax
import jax.numpy as jnp
from jax import lax
from jax.experimental import pallas as pl
from jax.experimental.pallas import tpu as pltpu

_EPS = 1e-8  # matches torch.nn.functional.cosine_similarity default eps


def _cosine_cost_kernel(cs_ref, ds_ref, inv_cs_ref, inv_ds_ref, out_ref):
    """One (tm, tn) output tile: cost = 1 - cos_sim(cs_tile, ds_tile)."""
    cs = cs_ref[...]  # (tm, D), input dtype
    ds = ds_ref[...]  # (tn, D), input dtype

    # f32 embeddings run the MXU at the (much faster) bf16 rate; accumulation
    # stays f32 via preferred_element_type.  bf16/fp8 inputs keep their dtype.
    mxu_dtype = jnp.bfloat16 if cs.dtype == jnp.float32 else cs.dtype

    # MXU: contract over D of both operands -- no explicit transpose (NT form).
    raw = lax.dot_general(
        cs.astype(mxu_dtype),
        ds.astype(mxu_dtype),
        dimension_numbers=(((1,), (1,)), ((), ())),
        preferred_element_type=jnp.float32,
    )  # (tm, tn) f32

    # Deferred normalization in the f32 epilogue:
    #   inv_cs: (tm, 1)  -> column (lane) broadcast
    #   inv_ds: (1, tn)  -> row (sublane) broadcast, already lane-major
    inv_cs = inv_cs_ref[...]
    inv_ds = inv_ds_ref[...]
    out_ref[...] = (1.0 - raw * inv_cs * inv_ds).astype(out_ref.dtype)


def _round_up(x: int, k: int) -> int:
    return ((x + k - 1) // k) * k


def _choose_tiles(n: int, m: int, d: int, in_itemsize: int):
    """Lane/sublane-aligned (tm, tn) + scoped-VMEM limit for the kernel."""
    tm = min(_round_up(n, 8), 512)
    tn = min(_round_up(m, 128), 512)

    def vmem_bytes(tm_, tn_):
        # Double-buffered embedding tiles + inv-norm tiles + f32 output tile.
        return (
            2 * (tm_ + tn_) * d * in_itemsize
            + 2 * (tm_ + tn_) * 4
            + 2 * tm_ * tn_ * 4
        )

    # ~24 MiB budget: fits v7x's 64 MiB physical VMEM with headroom and is far
    # under v5e/v6e capacity once vmem_limit_bytes is raised explicitly below.
    budget = 24 * 1024 * 1024
    while vmem_bytes(tm, tn) > budget and (tm > 8 or tn > 128):
        if tm >= tn and tm > 8:
            tm = max(8, _round_up(tm // 2, 8))
        elif tn > 128:
            tn = max(128, _round_up(tn // 2, 128))
        else:
            tm = max(8, _round_up(tm // 2, 8))

    # v7x has two TensorCores: if one tile would cover a large problem, split
    # the detection axis so both cores get work under "parallel" semantics.
    if pl.cdiv(n, tm) * pl.cdiv(m, tn) == 1 and m >= 512:
        tn = max(256, _round_up(pl.cdiv(m, 2), 128))

    vmem_limit = int(min(max(vmem_bytes(tm, tn) + (8 << 20), 16 << 20), 48 << 20))
    return tm, tn, vmem_limit


@jax.jit
def cosine_cost(cs_embeddings: jax.Array, ds_embeddings: jax.Array) -> jax.Array:
    """Computes the (N, M) cosine-distance cost matrix via a Pallas kernel."""
    n, d = cs_embeddings.shape
    m, d2 = ds_embeddings.shape
    assert d == d2, "candidate / detection embedding dims must match"

    if n == 0 or m == 0:
        return jnp.zeros((n, m), jnp.float32)

    itemsize = jnp.dtype(cs_embeddings.dtype).itemsize
    tm, tn, vmem_limit = _choose_tiles(n, m, d, itemsize)
    grid = (pl.cdiv(n, tm), pl.cdiv(m, tn))

    # Inverse row norms, computed once (tiny (N,1)/(1,M) f32 arrays) instead of
    # once per tile inside the kernel.  rsqrt(max(sumsq, eps^2)) == 1/max(||x||, eps).
    eps2 = jnp.float32(_EPS * _EPS)
    cs32 = cs_embeddings.astype(jnp.float32)
    ds32 = ds_embeddings.astype(jnp.float32)
    inv_cs = lax.rsqrt(
        jnp.maximum(jnp.sum(cs32 * cs32, axis=-1, keepdims=True), eps2)
    )  # (n, 1)
    inv_ds = lax.rsqrt(
        jnp.maximum(jnp.sum(ds32 * ds32, axis=-1), eps2)
    )[None, :]  # (1, m), lane-major for the epilogue row broadcast

    cost_est = pl.CostEstimate(
        flops=2 * n * m * d + 3 * n * m,
        transcendentals=0,
        bytes_accessed=(
            n * d * itemsize * grid[1]      # cs re-read once per column tile
            + m * d * itemsize * grid[0]    # ds re-read once per row tile
            + (n * grid[1] + m * grid[0]) * 4
            + n * m * 4
        ),
    )

    return pl.pallas_call(
        _cosine_cost_kernel,
        out_shape=jax.ShapeDtypeStruct((n, m), jnp.float32),
        grid_spec=pltpu.PrefetchScalarGridSpec(
            num_scalar_prefetch=0,
            grid=grid,
            in_specs=[
                pl.BlockSpec((tm, d), lambda i, j: (i, 0)),
                pl.BlockSpec((tn, d), lambda i, j: (j, 0)),
                pl.BlockSpec((tm, 1), lambda i, j: (i, 0)),
                pl.BlockSpec((1, tn), lambda i, j: (0, j)),
            ],
            out_specs=pl.BlockSpec((tm, tn), lambda i, j: (i, j)),
        ),
        compiler_params=pltpu.CompilerParams(
            dimension_semantics=("parallel", "parallel"),
            vmem_limit_bytes=vmem_limit,
        ),
        cost_estimate=cost_est,
    )(cs_embeddings, ds_embeddings, inv_cs, inv_ds)


class Cost:
    """JAX/Pallas analogue of the abstract `Cost` nn.Module."""

    def __init__(self, required_fields):
        self.required_fields = list(set(required_fields))

    def __call__(self, cs: dict, ds: dict) -> jax.Array:
        return self.forward(cs, ds)

    def forward(self, cs: dict, ds: dict) -> jax.Array:
        raise NotImplementedError


class CosineCost(Cost):
    """Concrete cost: cosine distance between embedding fields."""

    def __init__(self, field: str = "embeddings"):
        super().__init__(required_fields=[field])
        self.field = field

    def forward(self, cs: dict, ds: dict) -> jax.Array:
        return cosine_cost(cs[self.field], ds[self.field])


if __name__ == "__main__":
    key = jax.random.PRNGKey(0)
    k_cs, k_ds, k_cs2, k_ds2 = jax.random.split(key, 4)

    def reference(c, d):
        cn = c / jnp.maximum(jnp.linalg.norm(c, axis=-1, keepdims=True), _EPS)
        dn = d / jnp.maximum(jnp.linalg.norm(d, axis=-1, keepdims=True), _EPS)
        return 1.0 - cn @ dn.T

    cost_module = CosineCost("embeddings")

    # N tracklets, M detections, D-dim embeddings.
    N, M, D = 16, 16, 32
    cs = {"embeddings": jax.random.normal(k_cs, (N, D), dtype=jnp.float32)}
    ds = {"embeddings": jax.random.normal(k_ds, (M, D), dtype=jnp.float32)}
    cost_matrix = jax.block_until_ready(cost_module(cs, ds))
    assert cost_matrix.shape == (N, M)
    # bf16 MXU operands (with f32 accumulation) give ~1e-3 abs error on cosine
    # values; 2e-2 comfortably covers that while still catching real bugs.
    ref = reference(cs["embeddings"], ds["embeddings"])
    assert jnp.allclose(cost_matrix, ref, atol=2e-2, rtol=0), "mismatch vs reference"

    # Edge-tile coverage: N not a multiple of 8, M and D not multiples of 128
    # (exercises masked input loads, lane-remainder masking of D, and masked
    # output writeback -- the unpadded path requested by the perf review).
    N2, M2, D2 = 13, 40, 100
    cs2 = jax.random.normal(k_cs2, (N2, D2), dtype=jnp.float32)
    ds2 = jax.random.normal(k_ds2, (M2, D2), dtype=jnp.float32)
    cost2 = jax.block_until_ready(cosine_cost(cs2, ds2))
    assert cost2.shape == (N2, M2)
    assert jnp.allclose(cost2, reference(cs2, ds2), atol=2e-2, rtol=0), "edge mismatch"

    print("KERNEL_OK")
</pallas_src>

<mosaic_0001>
module attributes {stable_mosaic.version = 11 : i64} {
  func.func @_cosine_cost_kernel(%arg0: i32, %arg1: i32, %arg2: memref<16x32xf32, #tpu.memory_space<vmem>>, %arg3: memref<128x32xf32, #tpu.memory_space<vmem>>, %arg4: memref<16x1xf32, #tpu.memory_space<vmem>>, %arg5: memref<1x128xf32, #tpu.memory_space<vmem>>, %arg6: memref<16x128xf32, #tpu.memory_space<vmem>>) attributes {dimension_semantics = [#tpu.dimension_semantics<parallel>, #tpu.dimension_semantics<parallel>], iteration_bounds = array<i64: 1, 1>, scalar_prefetch = 0 : i64, scratch_operands = 0 : i64, tpu.core_type = #tpu.core_type<tc>, window_params = [{transform_indices = @transform_0, window_bounds = array<i64: 16, 32>}, {transform_indices = @transform_1, window_bounds = array<i64: 128, 32>}, {transform_indices = @transform_2, window_bounds = array<i64: 16, 1>}, {transform_indices = @transform_3, window_bounds = array<i64: 1, 128>}, {transform_indices = @transform_4, window_bounds = array<i64: 16, 128>}]} {
    %c0 = arith.constant 0 : index
    %c0_0 = arith.constant 0 : index
    %0 = vector.load %arg2[%c0, %c0_0] : memref<16x32xf32, #tpu.memory_space<vmem>>, vector<16x32xf32>
    %c0_1 = arith.constant 0 : index
    %c0_2 = arith.constant 0 : index
    %1 = vector.load %arg3[%c0_1, %c0_2] : memref<128x32xf32, #tpu.memory_space<vmem>>, vector<128x32xf32>
    %2 = arith.truncf %0 : vector<16x32xf32> to vector<16x32xbf16>
    %3 = arith.truncf %1 : vector<128x32xf32> to vector<128x32xbf16>
    %cst = arith.constant dense<0.000000e+00> : vector<16x128xf32>
    %4 = tpu.matmul %2, %3, %cst {dimension_numbers = #tpu.dot_dimension_numbers<[1], [1], [0], [0], [0, 0, 1, 0], [], []>} : vector<16x32xbf16>, vector<128x32xbf16>, vector<16x128xf32> -> vector<16x128xf32>
    %c0_3 = arith.constant 0 : index
    %c0_4 = arith.constant 0 : index
    %5 = vector.load %arg4[%c0_3, %c0_4] : memref<16x1xf32, #tpu.memory_space<vmem>>, vector<16x1xf32>
    %c0_5 = arith.constant 0 : index
    %c0_6 = arith.constant 0 : index
    %6 = vector.load %arg5[%c0_5, %c0_6] : memref<1x128xf32, #tpu.memory_space<vmem>>, vector<1x128xf32>
    %7 = vector.broadcast %5 : vector<16x1xf32> to vector<16x128xf32>
    %8 = arith.mulf %4, %7 : vector<16x128xf32>
    %9 = vector.broadcast %6 : vector<1x128xf32> to vector<16x128xf32>
    %10 = arith.mulf %8, %9 : vector<16x128xf32>
    %cst_7 = arith.constant 1.000000e+00 : f32
    %11 = vector.broadcast %cst_7 : f32 to vector<16x128xf32>
    %12 = arith.subf %11, %10 : vector<16x128xf32>
    %c0_8 = arith.constant 0 : index
    %c0_9 = arith.constant 0 : index
    %13 = vector.load %arg6[%c0_8, %c0_9] : memref<16x128xf32, #tpu.memory_space<vmem>>, vector<16x128xf32>
    tpu.vector_store %arg6[%c0_8, %c0_9], %12 {strides = array<i32>} : memref<16x128xf32, #tpu.memory_space<vmem>>, vector<16x128xf32>,
    return
  }
  func.func @transform_0(%arg0: i32, %arg1: i32) -> (i32, i32) {
    %c0_i32 = arith.constant 0 : i32
    %c0_i32_0 = arith.constant 0 : i32
    return %arg0, %c0_i32 : i32, i32
  }
  func.func @transform_1(%arg0: i32, %arg1: i32) -> (i32, i32) {
    %c0_i32 = arith.constant 0 : i32
    %c0_i32_0 = arith.constant 0 : i32
    return %arg1, %c0_i32 : i32, i32
  }
  func.func @transform_2(%arg0: i32, %arg1: i32) -> (i32, i32) {
    %c0_i32 = arith.constant 0 : i32
    %c0_i32_0 = arith.constant 0 : i32
    return %arg0, %c0_i32 : i32, i32
  }
  func.func @transform_3(%arg0: i32, %arg1: i32) -> (i32, i32) {
    %c0_i32 = arith.constant 0 : i32
    %c0_i32_0 = arith.constant 0 : i32
    return %c0_i32, %arg1 : i32, i32
  }
  func.func @transform_4(%arg0: i32, %arg1: i32) -> (i32, i32) {
    %c0_i32 = arith.constant 0 : i32
    return %arg0, %arg1 : i32, i32
  }
}

</mosaic_0001>

<llo_original>
// kernel: cosine_cost.1
$region0: #{cosine_cost.1}
  #allocation0 [shape = 'u32[]', space=smem, size = 0x4, offset = 0x4, fixed_abs, tag = 'smem constant byte address 0x4 - core index']
  #allocation1 [shape = 'u32[144,128]{1,0:T(1,128)}', space=vmem, size = 0x12000, scoped, tag = 'internal scratch']
  %s0 = inlined_call_operand.vmem [shape: f32[16,32], index: 0, kind: input, shape index: {}]
  %s1 = inlined_call_operand.vmem [shape: f32[16,32], index: 1, kind: input, shape index: {}]
  %s2 = inlined_call_operand.vmem [shape: f32[16,1], index: 2, kind: input, shape index: {}]
  %s3 = inlined_call_operand.vmem [shape: f32[1,16], index: 3, kind: input, shape index: {}]
  %s4 = inlined_call_operand.hbm [shape: f32[16,16], index: 4, kind: output, shape index: {}]
  %s5 = sld [smem:[#allocation0]]
  $region26: #{cosine_cost.1} parent=0
    _
  %s7 = ssub.s32 1, %s5
  %s8 = scalar_select 0, %s7, %s5
  $region1: #{cosine_cost.1} parent=0
    #allocation2 [shape = 'u8[8192]{0}', space=vmem, size = 0x2000, scoped, tag = 'output window, operand 0, single buffered']
    #allocation3 [shape = 's32[1]{0}', space=sflag, size = 0x4, scoped, tag = 'scoped memory for cosine_cost.1']
    %9 = vsyncpa [#allocation3], 0
    // Predicated region
    $region2: #{cosine_cost.1} parent=1 // pred_check
      _
    $region3: #{cosine_cost.1} parent=1 // pred_check_branch
      %11 = sbr.rel (0) target = $region5
    $region4: #{cosine_cost.1} parent=1 // pred_region
      _
    $region5: #{cosine_cost.1} parent=1 // pred_fallthru
      _
    // Predicated region
    $region6: #{cosine_cost.1} parent=1 // pred_check
      _
    $region7: #{cosine_cost.1} parent=1 // pred_check_branch
      %13 = sbr.rel (0) target = $region9
    $region8: #{cosine_cost.1} parent=1 // pred_region
      _
    $region9: #{cosine_cost.1} parent=1 // pred_fallthru
      _
    // Predicated region
    $region10: #{cosine_cost.1} parent=1 // pred_check
      _
    $region11: #{cosine_cost.1} parent=1 // pred_check_branch
      %15 = sbr.rel (0) target = $region13
    $region12: #{cosine_cost.1} parent=1 // pred_region
      _
    $region13: #{cosine_cost.1} parent=1 // pred_fallthru
      _
    // Predicated region
    $region14: #{cosine_cost.1} parent=1 // pred_check
      _
    $region15: #{cosine_cost.1} parent=1 // pred_check_branch
      %17 = sbr.rel (0) target = $region17
    $region16: #{cosine_cost.1} parent=1 // pred_region
      _
    $region17: #{cosine_cost.1} parent=1 // pred_fallthru
      _
    %v19 = vld [vmem:[%s0] sm:$0xff]
    %v20 = vld [vmem:[%s0 + $0x8] sm:$0xff]
    %v21 = vld [vmem:[%s1] sm:$0xff]
    %v22 = vld [vmem:[%s1 + $0x8] sm:$0xff]
    %v23 = vld [vmem:[%s1 + $0x10] sm:$0xff]
    %v24 = vld [vmem:[%s1 + $0x18] sm:$0xff]
    %v25 = vld [vmem:[%s1 + $0x20] sm:$0xff]
    %v26 = vld [vmem:[%s1 + $0x28] sm:$0xff]
    %v27 = vld [vmem:[%s1 + $0x30] sm:$0xff]
    %v28 = vld [vmem:[%s1 + $0x38] sm:$0xff]
    %v29 = vld [vmem:[%s1 + $0x40] sm:$0xff]
    %v30 = vld [vmem:[%s1 + $0x48] sm:$0xff]
    %v31 = vld [vmem:[%s1 + $0x50] sm:$0xff]
    %v32 = vld [vmem:[%s1 + $0x58] sm:$0xff]
    %v33 = vld [vmem:[%s1 + $0x60] sm:$0xff]
    %v34 = vld [vmem:[%s1 + $0x68] sm:$0xff]
    %v35 = vld [vmem:[%s1 + $0x70] sm:$0xff]
    %v36 = vld [vmem:[%s1 + $0x78] sm:$0xff]
    %v37 = vpack.c.bf16 %v20, %v19
    %v38 = vpack.c.bf16 %v22, %v21
    %v39 = vpack.c.bf16 %v24, %v23
    %v40 = vpack.c.bf16 %v26, %v25
    %v41 = vpack.c.bf16 %v28, %v27
    %v42 = vpack.c.bf16 %v30, %v29
    %v43 = vpack.c.bf16 %v32, %v31
    %v44 = vpack.c.bf16 %v34, %v33
    %v45 = vpack.c.bf16 %v36, %v35
    %vm46 = vcmask 261120
    %v48 = vsel %vm46, %v37, 0
    %v51 = vsel %vm46, %v38, 0
    %v54 = vsel %vm46, %v39, 0
    %v57 = vsel %vm46, %v40, 0
    %v60 = vsel %vm46, %v41, 0
    %v63 = vsel %vm46, %v42, 0
    %v66 = vsel %vm46, %v43, 0
    %v69 = vsel %vm46, %v44, 0
    %v72 = vsel %vm46, %v45, 0
    %74 = vmatprep.subr.bf16.mxu0 0
    %75 = vmatpush1.bf16.xpose.msra.mxu0 %v72
    %76 = vmatprep.subr.bf16.mxu0 0
    %77 = vmatpush1.bf16.xpose.msra.mxu0 %v69
    %78 = vmatprep.subr.bf16.mxu0 0
    %79 = vmatpush1.bf16.xpose.msra.mxu0 %v66
    %80 = vmatprep.subr.bf16.mxu0 0
    %81 = vmatpush1.bf16.xpose.msra.mxu0 %v63
    %82 = vmatprep.subr.bf16.mxu0 0
    %83 = vmatpush1.bf16.xpose.msra.mxu0 %v60
    %84 = vmatprep.subr.bf16.mxu0 0
    %85 = vmatpush1.bf16.xpose.msra.mxu0 %v57
    %86 = vmatprep.subr.bf16.mxu0 0
    %87 = vmatpush1.bf16.xpose.msra.mxu0 %v54
    %88 = vmatprep.subr.bf16.mxu0 0
    %89 = vmatpush1.bf16.xpose.msra.mxu0 %v51
    %90 = vmatprep.subr.bf16.mxu0 0
    %91 = vmatpush2.bf16.xpose.msra.mxu0 0
    %92 = vmatprep.subr.bf16.mxu0 0
    %93 = vmatpush2.bf16.xpose.msra.mxu0 0
    %94 = vmatprep.subr.bf16.mxu0 0
    %95 = vmatpush2.bf16.xpose.msra.mxu0 0
    %96 = vmatprep.subr.bf16.mxu0 0
    %97 = vmatpush2.bf16.xpose.msra.mxu0 0
    %98 = vmatprep.subr.bf16.mxu0 0
    %99 = vmatpush2.bf16.xpose.msra.mxu0 0
    %100 = vmatprep.subr.bf16.mxu0 0
    %101 = vmatpush2.bf16.xpose.msra.mxu0 0
    %102 = vmatprep.subr.bf16.mxu0 0
    %103 = vmatpush2.bf16.xpose.msra.mxu0 0
    %104 = vmatprep.subr.bf16.mxu0 0
    %105 = vmatpush2.bf16.xpose.msra.mxu0 0
    %106 = vmatprep.mubr.bf16.mxu0 0
    %107 = vmatmul.mubr.bf16.gmra.mxu0 %v48
    %v108 = vpop.f32.mrf.mxu0
    %v109 = vadd.f32 0.0, %v108
    %v110 = vpop.f32.mrf.mxu0
    %v111 = vpop.f32.mrf.mxu0
    %v112 = vadd.f32 0.0, %v111
    %v113 = vpop.f32.mrf.mxu0
    %114 = vdwg.mxu0
    %v115 = vld [vmem:[%s2] sm:$0xff]
    %v116 = vld [vmem:[%s2 + $0x8] sm:$0xff]
    %v117 = vld [vmem:[%s3] sm:$0x1]
    %119 = vset.pattern.permute.xlu0 0
    %120 = vperm.xlu0 %119, %v115
    %v121 = vpop.permute.xlu0 %120
    %124 = vset.pattern.permute.xlu0 0
    %125 = vperm.xlu0 %124, %v116
    %v126 = vpop.permute.xlu0 %125
    %v128 = vmul.f32 %v109, %v121
    %v129 = vmul.f32 %v112, %v126
    %v131 = vlaneseq
    %v132 = vshrl.u32 %v131, 7
    %v133 = vsub.s32 0, %v132
    %v134 = vrot.slane %v117, %v133
    %v136 = vmul.f32 %v128, %v134
    %v137 = vmul.f32 %v129, %v134
    %v138 = vsub.f32 1.0, %v136
    %v139 = vsub.f32 1.0, %v137
    %140 = vst [vmem:[#allocation2] sm:$0xff] %v138
    %141 = vst [vmem:[#allocation2 + $0x8] sm:$0xff] %v139
    // Predicated region
    $region18: #{cosine_cost.1} parent=1 // pred_check
      _
    $region19: #{cosine_cost.1} parent=1 // pred_check_branch
      %143 = sbr.rel (0) target = $region21
    $region20: #{cosine_cost.1} parent=1 // pred_region
      %s145 = ssub.s32 256, 256
      %146 = vsyncadd [#allocation3], %s145
      %s147 = sshll.u32 [#allocation2], 4
      %s148 = int_to_ptr.vmem [resolvable:$true] %s147
      %153 = dma.vmem_to_hbm [thread:$0]  %s148, 256, %s4, [#allocation3], 128, 128, 8
    $region21: #{cosine_cost.1} parent=1 // pred_fallthru
      _
    // Predicated region
    $region22: #{cosine_cost.1} parent=1 // pred_check
      _
    $region23: #{cosine_cost.1} parent=1 // pred_check_branch
      %155 = sbr.rel (0) target = $region25
    $region24: #{cosine_cost.1} parent=1 // pred_region
      %156 = dma.done [#allocation3], 256
    $region25: #{cosine_cost.1} parent=1 // pred_fallthru
      _
    %157 = vsyncpa [#allocation3], 1

</llo_original>
